<compile_context>
chip_gen: v7x
topology: tpu7x:2x2x1
jax: 0.10.0
libtpu: 0.0.40
codegen_flags: <defaults>
</compile_context>

<pallas_src>
import numpy as np
import jax
import jax.numpy as jnp
from jax.experimental import pallas as pl
from jax.experimental.pallas import tpu as pltpu

DIM = 32
ENTITY_COUNT = 32
RELATION_COUNT = 8
MARGIN = 1.0


def _round_up(x, m):
    return ((x + m - 1) // m) * m


# ----------------------------------------------------------------------------
# Fused kernel: (step 0) normalize tables into a resident VMEM concat table,
# then per grid step gather TILE_B pos+neg triplets via one signed multi-hot
# MXU dot, reduce to L1 distances, and emit the margin-ranking loss.
# Tables are stored transposed, (dim, rows), so the batch lives on lanes.
# ----------------------------------------------------------------------------
def _make_kernel(entity_count, e_pad, r_pad, margin, tile_b):
    f32 = jnp.float32

    def kernel(idx_ref, head_ref, rel_ref, tail_ref,
               out_ref, hn_ref, tn_ref, cat_ref):
        step = pl.program_id(0)

        # --- Normalize head/tail ONCE; build the resident concat table.
        @pl.when(step == 0)
        def _():
            def l2_normalize(w_t):
                sumsq = jnp.sum(w_t * w_t, axis=0, keepdims=True)   # (1, rows)
                normed = w_t * jax.lax.rsqrt(sumsq)                  # EUP rsqrt
                col = jax.lax.broadcasted_iota(jnp.int32, w_t.shape, 1)
                # Rows >= entity_count (padding row + alignment pad) untouched,
                # matching weight.data[:-1, :].div_(norm).
                return jnp.where(col < entity_count, normed, w_t)

            head_n = l2_normalize(head_ref[...])                     # (dim, e_pad)
            tail_n = l2_normalize(tail_ref[...])                     # (dim, e_pad)
            hn_ref[...] = head_n
            tn_ref[...] = tail_n
            cat_ref[...] = jnp.concatenate(
                [head_n, rel_ref[...], tail_n], axis=1)              # (dim, e+r+e)

        # --- Signed multi-hot gather: one MXU dot for pos AND neg diffs.
        idx = idx_ref[...]                                           # (8, tile_b) int32
        iota_e = jax.lax.broadcasted_iota(jnp.int32, (e_pad, tile_b), 0)
        iota_r = iota_e[:r_pad, :]                                   # reuse, no 2nd iota

        def signed_multihot(h_row, r_row, t_row):
            h_oh = (iota_e == idx[h_row:h_row + 1, :]).astype(f32)   # (e_pad, tile_b)
            r_oh = (iota_r == idx[r_row:r_row + 1, :]).astype(f32)   # (r_pad, tile_b)
            t_oh = (iota_e == idx[t_row:t_row + 1, :]).astype(f32)   # (e_pad, tile_b)
            return jnp.concatenate([h_oh, r_oh, -t_oh], axis=0)      # (+h, +r, -t)

        mh = jnp.concatenate(
            [signed_multihot(0, 1, 2),          # positive triplets
             signed_multihot(3, 4, 5)],         # negative triplets
            axis=1)                                                  # (rows, 2*tile_b)

        # (dim, rows) @ (rows, 2*tile_b) -> diff vectors for pos|neg on lanes.
        diff = jnp.dot(cat_ref[...], mh, preferred_element_type=f32)

        # L1 over the embedding dim (sublane reduce) -> (1, 2*tile_b).
        d = jnp.sum(jnp.abs(diff), axis=0, keepdims=True)
        pos_d = d[:, :tile_b]
        neg_d = d[:, tile_b:]
        loss = jnp.maximum(pos_d - neg_d + margin, 0.0)              # target = -1

        # One unmasked store: rows = [loss, pos_d, neg_d, 0...].
        out_ref[...] = jnp.concatenate(
            [loss, pos_d, neg_d, jnp.zeros((5, tile_b), f32)], axis=0)

    return kernel


def transe_forward(head_w, rel_w, tail_w, pos_triplets, neg_triplets,
                   margin=MARGIN, max_tile_b=512):
    """Returns (loss, pos_dist, neg_dist, normalized_head_w, normalized_tail_w)."""
    assert pos_triplets.shape[1] == 3 and neg_triplets.shape[1] == 3
    entity_rows, dim = head_w.shape            # entity_count + 1
    rel_rows = rel_w.shape[0]                  # relation_count + 1
    entity_count = entity_rows - 1
    B = pos_triplets.shape[0]

    f32 = jnp.float32
    e_pad = _round_up(entity_rows, 8)
    r_pad = _round_up(rel_rows, 8)
    rows_total = 2 * e_pad + r_pad
    # One grid step for realistic batches (the grid is a serial loop with
    # ~0.35us/step overhead); cap tile_b to keep the multi-hot temp small.
    tile_b = min(_round_up(max(B, 1), 128), max_tile_b)
    b_pad = _round_up(max(B, 1), tile_b)
    num_tiles = b_pad // tile_b

    # Tables transposed to (dim, rows); zero-pad extra rows (never indexed).
    # TODO(synk): for production, keep these transposed/padded buffers
    # persistent across training steps instead of rebuilding per call.
    head_t = jnp.zeros((dim, e_pad), f32).at[:, :entity_rows].set(head_w.T.astype(f32))
    tail_t = jnp.zeros((dim, e_pad), f32).at[:, :entity_rows].set(tail_w.T.astype(f32))
    rel_t = jnp.zeros((dim, r_pad), f32).at[:, :rel_rows].set(rel_w.T.astype(f32))

    # Index rows: [pos_h, pos_r, pos_t, neg_h, neg_r, neg_t, 0, 0], batch on lanes.
    idx = jnp.zeros((8, b_pad), jnp.int32)
    idx = idx.at[0:3, :B].set(pos_triplets.T.astype(jnp.int32))
    idx = idx.at[3:6, :B].set(neg_triplets.T.astype(jnp.int32))

    kernel = _make_kernel(entity_count, e_pad, r_pad, float(margin), tile_b)

    table_spec_e = pl.BlockSpec((dim, e_pad), lambda i: (0, 0))   # resident table
    table_spec_r = pl.BlockSpec((dim, r_pad), lambda i: (0, 0))

    out, hn_t, tn_t = pl.pallas_call(
        kernel,
        grid=(num_tiles,),
        in_specs=[
            pl.BlockSpec((8, tile_b), lambda i: (0, i)),          # indices (lane-dense)
            table_spec_e,                                         # head table
            table_spec_r,                                         # relation table
            table_spec_e,                                         # tail table
        ],
        out_specs=[
            pl.BlockSpec((8, tile_b), lambda i: (0, i)),          # [loss;pos;neg;pad]
            table_spec_e,                                         # normalized head
            table_spec_e,                                         # normalized tail
        ],
        out_shape=(
            jax.ShapeDtypeStruct((8, b_pad), f32),
            jax.ShapeDtypeStruct((dim, e_pad), f32),
            jax.ShapeDtypeStruct((dim, e_pad), f32),
        ),
        scratch_shapes=[pltpu.VMEM((dim, rows_total), f32)],      # concat table
        # head_t -> normalized head output, tail_t -> normalized tail output:
        # in-place update, no extra HBM allocations/copies.
        input_output_aliases={1: 1, 3: 2},
        # Batch axis "arbitrary": the normalized-table outputs are resident
        # (constant block index) across the whole grid.
        compiler_params=pltpu.CompilerParams(dimension_semantics=("arbitrary",)),
    )(idx, head_t, rel_t, tail_t)

    loss, pos_d, neg_d = out[0, :B], out[1, :B], out[2, :B]
    head_norm = hn_t[:, :entity_rows].T
    tail_norm = tn_t[:, :entity_rows].T
    return loss, pos_d, neg_d, head_norm, tail_norm


# ----------------------------------------------------------------------------
# Deterministic parameter init (mirrors Net.__init__):
#   uniform(-6/sqrt(dim), 6/sqrt(dim)); relation rows [:-1] divided by L1 norm.
# ----------------------------------------------------------------------------
def init_params(key, entity_count, relation_count, dim):
    r = 6.0 / np.sqrt(dim)
    k1, k2, k3 = jax.random.split(key, 3)
    head_w = jax.random.uniform(k1, (entity_count + 1, dim), jnp.float32, -r, r)
    tail_w = jax.random.uniform(k2, (entity_count + 1, dim), jnp.float32, -r, r)
    rel_w = jax.random.uniform(k3, (relation_count + 1, dim), jnp.float32, -r, r)
    l1 = jnp.sum(jnp.abs(rel_w[:-1, :]), axis=1, keepdims=True)
    rel_w = rel_w.at[:-1, :].set(rel_w[:-1, :] / l1)
    return head_w, rel_w, tail_w


# Pure-JAX reference for a sanity check.
def _reference(head_w, rel_w, tail_w, pos, neg, margin=MARGIN):
    hw = head_w.at[:-1].set(
        head_w[:-1] / jnp.linalg.norm(head_w[:-1], axis=1, keepdims=True))
    tw = tail_w.at[:-1].set(
        tail_w[:-1] / jnp.linalg.norm(tail_w[:-1], axis=1, keepdims=True))

    def dist(trip):
        d = hw[trip[:, 0]] + rel_w[trip[:, 1]] - tw[trip[:, 2]]
        return jnp.sum(jnp.abs(d), axis=1)

    pd, nd = dist(pos), dist(neg)
    return jnp.maximum(pd - nd + margin, 0.0), pd, nd, hw, tw


if __name__ == "__main__":
    key = jax.random.PRNGKey(0)
    kw, kph, kpr, kpt, knh, knr, knt = jax.random.split(key, 7)
    head_w, rel_w, tail_w = init_params(kw, ENTITY_COUNT, RELATION_COUNT, DIM)

    B = 8
    pos_triplets = jnp.stack([
        jax.random.randint(kph, (B,), 0, ENTITY_COUNT),
        jax.random.randint(kpr, (B,), 0, RELATION_COUNT),
        jax.random.randint(kpt, (B,), 0, ENTITY_COUNT),
    ], axis=1).astype(jnp.int32)
    neg_triplets = jnp.stack([
        jax.random.randint(knh, (B,), 0, ENTITY_COUNT),
        jax.random.randint(knr, (B,), 0, RELATION_COUNT),
        jax.random.randint(knt, (B,), 0, ENTITY_COUNT),
    ], axis=1).astype(jnp.int32)

    loss, pos_d, neg_d, hw_n, tw_n = transe_forward(
        head_w, rel_w, tail_w, pos_triplets, neg_triplets)
    jax.block_until_ready((loss, pos_d, neg_d, hw_n, tw_n))

    ref_loss, ref_pd, ref_nd, ref_hw, ref_tw = _reference(
        head_w, rel_w, tail_w, pos_triplets, neg_triplets)
    np.testing.assert_allclose(np.asarray(loss), np.asarray(ref_loss), rtol=1e-4, atol=1e-5)
    np.testing.assert_allclose(np.asarray(pos_d), np.asarray(ref_pd), rtol=1e-4, atol=1e-5)
    np.testing.assert_allclose(np.asarray(neg_d), np.asarray(ref_nd), rtol=1e-4, atol=1e-5)
    np.testing.assert_allclose(np.asarray(hw_n), np.asarray(ref_hw), rtol=1e-4, atol=1e-6)
    np.testing.assert_allclose(np.asarray(tw_n), np.asarray(ref_tw), rtol=1e-4, atol=1e-6)

    print("KERNEL_OK")
</pallas_src>

<mosaic_0001>
module attributes {stable_mosaic.version = 11 : i64} {
  func.func @kernel(%arg0: i32, %arg1: memref<8x128xi32, #tpu.memory_space<vmem>>, %arg2: memref<32x40xf32, #tpu.memory_space<vmem>>, %arg3: memref<32x16xf32, #tpu.memory_space<vmem>>, %arg4: memref<32x40xf32, #tpu.memory_space<vmem>>, %arg5: memref<8x128xf32, #tpu.memory_space<vmem>>, %arg6: memref<32x40xf32, #tpu.memory_space<vmem>>, %arg7: memref<32x40xf32, #tpu.memory_space<vmem>>, %arg8: memref<32x96xf32, #tpu.memory_space<vmem>>) attributes {dimension_semantics = [#tpu.dimension_semantics<arbitrary>], iteration_bounds = array<i64: 1>, scalar_prefetch = 0 : i64, scratch_operands = 1 : i64, tpu.core_type = #tpu.core_type<tc>, window_params = [{transform_indices = @transform_0, window_bounds = array<i64: 8, 128>}, {pipeline_mode = #tpu.pipeline_mode<synchronous>, transform_indices = @transform_1, window_bounds = array<i64: 32, 40>}, {pipeline_mode = #tpu.pipeline_mode<synchronous>, transform_indices = @transform_2, window_bounds = array<i64: 32, 16>}, {pipeline_mode = #tpu.pipeline_mode<synchronous>, transform_indices = @transform_3, window_bounds = array<i64: 32, 40>}, {transform_indices = @transform_4, window_bounds = array<i64: 8, 128>}, {pipeline_mode = #tpu.pipeline_mode<synchronous>, transform_indices = @transform_5, window_bounds = array<i64: 32, 40>}, {pipeline_mode = #tpu.pipeline_mode<synchronous>, transform_indices = @transform_6, window_bounds = array<i64: 32, 40>}]} {
    %c0_i32 = arith.constant 0 : i32
    %0 = arith.cmpi eq, %arg0, %c0_i32 : i32
    %1 = arith.extui %0 : i1 to i32
    %c0_i32_0 = arith.constant 0 : i32
    %2 = arith.cmpi ne, %1, %c0_i32_0 : i32
    scf.if %2 {
      %c0_12 = arith.constant 0 : index
      %c0_13 = arith.constant 0 : index
      %58 = vector.load %arg2[%c0_12, %c0_13] : memref<32x40xf32, #tpu.memory_space<vmem>>, vector<32x40xf32>
      %59 = arith.mulf %58, %58 : vector<32x40xf32>
      %cst_14 = arith.constant dense<0.000000e+00> : vector<40xf32>
      %60 = vector.multi_reduction <add>, %59, %cst_14 [0] : vector<32x40xf32> to vector<40xf32>
      %61 = vector.shape_cast %60 : vector<40xf32> to vector<1x40xf32>
      %62 = math.rsqrt %61 : vector<1x40xf32>
      %63 = vector.broadcast %62 : vector<1x40xf32> to vector<32x40xf32>
      %64 = arith.mulf %58, %63 : vector<32x40xf32>
      %65 = tpu.iota {dimensions = array<i32: 1>} : vector<32x40xi32>
      %c32_i32 = arith.constant 32 : i32
      %66 = vector.broadcast %c32_i32 : i32 to vector<32x40xi32>
      %67 = arith.cmpi slt, %65, %66 : vector<32x40xi32>
      %68 = arith.select %67, %64, %58 : vector<32x40xi1>, vector<32x40xf32>
      %c0_15 = arith.constant 0 : index
      %c0_16 = arith.constant 0 : index
      %69 = vector.load %arg4[%c0_15, %c0_16] : memref<32x40xf32, #tpu.memory_space<vmem>>, vector<32x40xf32>
      %70 = arith.mulf %69, %69 : vector<32x40xf32>
      %cst_17 = arith.constant dense<0.000000e+00> : vector<40xf32>
      %71 = vector.multi_reduction <add>, %70, %cst_17 [0] : vector<32x40xf32> to vector<40xf32>
      %72 = vector.shape_cast %71 : vector<40xf32> to vector<1x40xf32>
      %73 = math.rsqrt %72 : vector<1x40xf32>
      %74 = vector.broadcast %73 : vector<1x40xf32> to vector<32x40xf32>
      %75 = arith.mulf %69, %74 : vector<32x40xf32>
      %76 = tpu.iota {dimensions = array<i32: 1>} : vector<32x40xi32>
      %c32_i32_18 = arith.constant 32 : i32
      %77 = vector.broadcast %c32_i32_18 : i32 to vector<32x40xi32>
      %78 = arith.cmpi slt, %76, %77 : vector<32x40xi32>
      %79 = arith.select %78, %75, %69 : vector<32x40xi1>, vector<32x40xf32>
      %c0_19 = arith.constant 0 : index
      %c0_20 = arith.constant 0 : index
      %80 = vector.load %arg6[%c0_19, %c0_20] : memref<32x40xf32, #tpu.memory_space<vmem>>, vector<32x40xf32>
      tpu.vector_store %arg6[%c0_19, %c0_20], %68 {strides = array<i32>} : memref<32x40xf32, #tpu.memory_space<vmem>>, vector<32x40xf32>,
      %c0_21 = arith.constant 0 : index
      %c0_22 = arith.constant 0 : index
      %81 = vector.load %arg7[%c0_21, %c0_22] : memref<32x40xf32, #tpu.memory_space<vmem>>, vector<32x40xf32>
      tpu.vector_store %arg7[%c0_21, %c0_22], %79 {strides = array<i32>} : memref<32x40xf32, #tpu.memory_space<vmem>>, vector<32x40xf32>,
      %c0_23 = arith.constant 0 : index
      %c0_24 = arith.constant 0 : index
      %82 = vector.load %arg3[%c0_23, %c0_24] : memref<32x16xf32, #tpu.memory_space<vmem>>, vector<32x16xf32>
      %83 = tpu.concatenate %68, %82, %79 in 1 : vector<32x40xf32>, vector<32x16xf32>, vector<32x40xf32> -> vector<32x96xf32>
      %c0_25 = arith.constant 0 : index
      %c0_26 = arith.constant 0 : index
      %84 = vector.load %arg8[%c0_25, %c0_26] : memref<32x96xf32, #tpu.memory_space<vmem>>, vector<32x96xf32>
      tpu.vector_store %arg8[%c0_25, %c0_26], %83 {strides = array<i32>} : memref<32x96xf32, #tpu.memory_space<vmem>>, vector<32x96xf32>,
    } else {
    }
    %c0 = arith.constant 0 : index
    %c0_1 = arith.constant 0 : index
    %3 = vector.load %arg1[%c0, %c0_1] : memref<8x128xi32, #tpu.memory_space<vmem>>, vector<8x128xi32>
    %4 = tpu.iota {dimensions = array<i32: 0>} : vector<40x128xi32>
    %5 = vector.extract_strided_slice %4 {offsets = [0, 0], sizes = [16, 128], strides = [1, 1]} : vector<40x128xi32> to vector<16x128xi32>
    %6 = vector.extract_strided_slice %3 {offsets = [0, 0], sizes = [1, 128], strides = [1, 1]} : vector<8x128xi32> to vector<1x128xi32>
    %7 = vector.broadcast %6 : vector<1x128xi32> to vector<40x128xi32>
    %8 = arith.cmpi eq, %4, %7 : vector<40x128xi32>
    %9 = arith.extui %8 : vector<40x128xi1> to vector<40x128xi32>
    %10 = arith.sitofp %9 : vector<40x128xi32> to vector<40x128xf32>
    %11 = vector.extract_strided_slice %3 {offsets = [1, 0], sizes = [1, 128], strides = [1, 1]} : vector<8x128xi32> to vector<1x128xi32>
    %12 = vector.broadcast %11 : vector<1x128xi32> to vector<16x128xi32>
    %13 = arith.cmpi eq, %5, %12 : vector<16x128xi32>
    %14 = arith.extui %13 : vector<16x128xi1> to vector<16x128xi32>
    %15 = arith.sitofp %14 : vector<16x128xi32> to vector<16x128xf32>
    %16 = vector.extract_strided_slice %3 {offsets = [2, 0], sizes = [1, 128], strides = [1, 1]} : vector<8x128xi32> to vector<1x128xi32>
    %17 = vector.broadcast %16 : vector<1x128xi32> to vector<40x128xi32>
    %18 = arith.cmpi eq, %4, %17 : vector<40x128xi32>
    %19 = arith.extui %18 : vector<40x128xi1> to vector<40x128xi32>
    %20 = arith.sitofp %19 : vector<40x128xi32> to vector<40x128xf32>
    %cst = arith.constant 0.000000e+00 : f32
    %21 = vector.broadcast %cst : f32 to vector<40x128xf32>
    %22 = arith.subf %21, %20 : vector<40x128xf32>
    %23 = tpu.concatenate %10, %15, %22 in 0 : vector<40x128xf32>, vector<16x128xf32>, vector<40x128xf32> -> vector<96x128xf32>
    %24 = vector.extract_strided_slice %3 {offsets = [3, 0], sizes = [1, 128], strides = [1, 1]} : vector<8x128xi32> to vector<1x128xi32>
    %25 = vector.broadcast %24 : vector<1x128xi32> to vector<40x128xi32>
    %26 = arith.cmpi eq, %4, %25 : vector<40x128xi32>
    %27 = arith.extui %26 : vector<40x128xi1> to vector<40x128xi32>
    %28 = arith.sitofp %27 : vector<40x128xi32> to vector<40x128xf32>
    %29 = vector.extract_strided_slice %3 {offsets = [4, 0], sizes = [1, 128], strides = [1, 1]} : vector<8x128xi32> to vector<1x128xi32>
    %30 = vector.broadcast %29 : vector<1x128xi32> to vector<16x128xi32>
    %31 = arith.cmpi eq, %5, %30 : vector<16x128xi32>
    %32 = arith.extui %31 : vector<16x128xi1> to vector<16x128xi32>
    %33 = arith.sitofp %32 : vector<16x128xi32> to vector<16x128xf32>
    %34 = vector.extract_strided_slice %3 {offsets = [5, 0], sizes = [1, 128], strides = [1, 1]} : vector<8x128xi32> to vector<1x128xi32>
    %35 = vector.broadcast %34 : vector<1x128xi32> to vector<40x128xi32>
    %36 = arith.cmpi eq, %4, %35 : vector<40x128xi32>
    %37 = arith.extui %36 : vector<40x128xi1> to vector<40x128xi32>
    %38 = arith.sitofp %37 : vector<40x128xi32> to vector<40x128xf32>
    %cst_2 = arith.constant 0.000000e+00 : f32
    %39 = vector.broadcast %cst_2 : f32 to vector<40x128xf32>
    %40 = arith.subf %39, %38 : vector<40x128xf32>
    %41 = tpu.concatenate %28, %33, %40 in 0 : vector<40x128xf32>, vector<16x128xf32>, vector<40x128xf32> -> vector<96x128xf32>
    %42 = tpu.concatenate %23, %41 in 1 : vector<96x128xf32>, vector<96x128xf32> -> vector<96x256xf32>
    %c0_3 = arith.constant 0 : index
    %c0_4 = arith.constant 0 : index
    %43 = vector.load %arg8[%c0_3, %c0_4] : memref<32x96xf32, #tpu.memory_space<vmem>>, vector<32x96xf32>
    %cst_5 = arith.constant dense<0.000000e+00> : vector<32x256xf32>
    %44 = tpu.matmul %43, %42, %cst_5 {dimension_numbers = #tpu.dot_dimension_numbers<[1], [0], [0], [1], [0, 0, 1, 1], [], []>} : vector<32x96xf32>, vector<96x256xf32>, vector<32x256xf32> -> vector<32x256xf32>
    %45 = math.absf %44 : vector<32x256xf32>
    %cst_6 = arith.constant dense<0.000000e+00> : vector<256xf32>
    %46 = vector.multi_reduction <add>, %45, %cst_6 [0] : vector<32x256xf32> to vector<256xf32>
    %47 = vector.shape_cast %46 : vector<256xf32> to vector<1x256xf32>
    %48 = vector.extract_strided_slice %47 {offsets = [0, 0], sizes = [1, 128], strides = [1, 1]} : vector<1x256xf32> to vector<1x128xf32>
    %49 = vector.extract_strided_slice %47 {offsets = [0, 128], sizes = [1, 128], strides = [1, 1]} : vector<1x256xf32> to vector<1x128xf32>
    %50 = arith.subf %48, %49 : vector<1x128xf32>
    %cst_7 = arith.constant 1.000000e+00 : f32
    %51 = vector.broadcast %cst_7 : f32 to vector<1x128xf32>
    %52 = arith.addf %50, %51 : vector<1x128xf32>
    %cst_8 = arith.constant 0.000000e+00 : f32
    %53 = vector.broadcast %cst_8 : f32 to vector<1x128xf32>
    %54 = arith.maximumf %52, %53 : vector<1x128xf32>
    %cst_9 = arith.constant 0.000000e+00 : f32
    %55 = vector.broadcast %cst_9 : f32 to vector<5x128xf32>
    %56 = tpu.concatenate %54, %48, %49, %55 in 0 : vector<1x128xf32>, vector<1x128xf32>, vector<1x128xf32>, vector<5x128xf32> -> vector<8x128xf32>
    %c0_10 = arith.constant 0 : index
    %c0_11 = arith.constant 0 : index
    %57 = vector.load %arg5[%c0_10, %c0_11] : memref<8x128xf32, #tpu.memory_space<vmem>>, vector<8x128xf32>
    tpu.vector_store %arg5[%c0_10, %c0_11], %56 {strides = array<i32>} : memref<8x128xf32, #tpu.memory_space<vmem>>, vector<8x128xf32>,
    return
  }
  func.func @transform_0(%arg0: i32) -> (i32, i32) {
    %c0_i32 = arith.constant 0 : i32
    %c0_i32_0 = arith.constant 0 : i32
    return %c0_i32, %arg0 : i32, i32
  }
  func.func @transform_1(%arg0: i32) -> (i32, i32) {
    %c0_i32 = arith.constant 0 : i32
    %c0_i32_0 = arith.constant 0 : i32
    %c0_i32_1 = arith.constant 0 : i32
    return %c0_i32, %c0_i32_0 : i32, i32
  }
  func.func @transform_2(%arg0: i32) -> (i32, i32) {
    %c0_i32 = arith.constant 0 : i32
    %c0_i32_0 = arith.constant 0 : i32
    %c0_i32_1 = arith.constant 0 : i32
    return %c0_i32, %c0_i32_0 : i32, i32
  }
  func.func @transform_3(%arg0: i32) -> (i32, i32) {
    %c0_i32 = arith.constant 0 : i32
    %c0_i32_0 = arith.constant 0 : i32
    %c0_i32_1 = arith.constant 0 : i32
    return %c0_i32, %c0_i32_0 : i32, i32
  }
  func.func @transform_4(%arg0: i32) -> (i32, i32) {
    %c0_i32 = arith.constant 0 : i32
    %c0_i32_0 = arith.constant 0 : i32
    return %c0_i32, %arg0 : i32, i32
  }
  func.func @transform_5(%arg0: i32) -> (i32, i32) {
    %c0_i32 = arith.constant 0 : i32
    %c0_i32_0 = arith.constant 0 : i32
    %c0_i32_1 = arith.constant 0 : i32
    return %c0_i32, %c0_i32_0 : i32, i32
  }
  func.func @transform_6(%arg0: i32) -> (i32, i32) {
    %c0_i32 = arith.constant 0 : i32
    %c0_i32_0 = arith.constant 0 : i32
    %c0_i32_1 = arith.constant 0 : i32
    return %c0_i32, %c0_i32_0 : i32, i32
  }
}

</mosaic_0001>

<llo_original>
// kernel: tpu_custom_call.1
$region0: #{tpu_custom_call.1}
  #allocation0 [shape = 'u32[]', space=smem, size = 0x4, offset = 0x4, fixed_abs, tag = 'smem constant byte address 0x4 - core index']
  #allocation1 [shape = 'u32[144,128]{1,0:T(1,128)}', space=vmem, size = 0x12000, scoped, tag = 'internal scratch']
  #allocation2 [shape = 'f32[32,96]{1,0:T(8,128)}', space=vmem, size = 0x4000, scoped, tag = 'scratch operand']
  %s0 = inlined_call_operand.vmem [shape: s32[8,128], index: 0, kind: input, shape index: {}]
  %s1 = inlined_call_operand.hbm [shape: f32[32,40], index: 1, kind: input, shape index: {}, may-alias: {1,5}]
  %s2 = inlined_call_operand.vmem [shape: f32[32,16], index: 2, kind: input, shape index: {}]
  %s3 = inlined_call_operand.hbm [shape: f32[32,40], index: 3, kind: input, shape index: {}, may-alias: {3,6}]
  %s4 = inlined_call_operand.hbm [shape: f32[8,128], index: 4, kind: output, shape index: {0}]
  %s5 = inlined_call_operand.hbm [shape: f32[32,40], index: 5, kind: output, shape index: {1}, may-alias: {1,5}]
  %s6 = inlined_call_operand.hbm [shape: f32[32,40], index: 6, kind: output, shape index: {2}, may-alias: {3,6}]
  %7 = xla_tuple %s4, %s5, %s6
  %s8 = sld [smem:[#allocation0]]
  $region54: #{tpu_custom_call.1} parent=0
    _
  %s10 = ssub.s32 1, %s8
  %s11 = scalar_select 0, %s10, %s8
  $region1: #{tpu_custom_call.1} parent=0
    #allocation3 [shape = 'u8[16384]{0}', space=vmem, size = 0x4000, scoped, tag = 'input window, operand 1, single buffered']
    #allocation4 [shape = 's32[1]{0}', space=sflag, size = 0x4, scoped, tag = 'scoped memory for tpu_custom_call.1']
    #allocation5 [shape = 's32[1]{0}', space=sflag, size = 0x4, scoped, tag = 'scoped memory for tpu_custom_call.1']
    #allocation6 [shape = 'u8[16384]{0}', space=vmem, size = 0x4000, scoped, tag = 'input window, operand 3, single buffered']
    #allocation7 [shape = 's32[1]{0}', space=sflag, size = 0x4, scoped, tag = 'scoped memory for tpu_custom_call.1']
    #allocation8 [shape = 'u8[4096]{0}', space=vmem, size = 0x1000, scoped, tag = 'output window, operand 0, single buffered']
    #allocation9 [shape = 'u8[16384]{0}', space=vmem, size = 0x4000, scoped, tag = 'output window, operand 1, single buffered']
    #allocation10 [shape = 's32[1]{0}', space=sflag, size = 0x4, scoped, tag = 'scoped memory for tpu_custom_call.1']
    #allocation11 [shape = 'u8[16384]{0}', space=vmem, size = 0x4000, scoped, tag = 'output window, operand 2, single buffered']
    %12 = vsyncpa [#allocation4], 0
    %13 = vsyncpa [#allocation7], 0
    %14 = vsyncpa [#allocation5], 0
    %15 = vsyncpa [#allocation10], 0
    // Predicated region
    $region2: #{tpu_custom_call.1} parent=1 // pred_check
      _
    $region3: #{tpu_custom_call.1} parent=1 // pred_check_branch
      %17 = sbr.rel (0) target = $region5
    $region4: #{tpu_custom_call.1} parent=1 // pred_region
      _
    $region5: #{tpu_custom_call.1} parent=1 // pred_fallthru
      _
    // Predicated region
    $region6: #{tpu_custom_call.1} parent=1 // pred_check
      _
    $region7: #{tpu_custom_call.1} parent=1 // pred_check_branch
      %19 = sbr.rel (0) target = $region9
    $region8: #{tpu_custom_call.1} parent=1 // pred_region
      %s21 = ssub.s32 512, 512
      %22 = vsyncadd [#allocation4], %s21
      %s23 = sshll.u32 [#allocation3], 4
      %s24 = int_to_ptr.vmem [resolvable:$true] %s23
      %29 = dma.hbm_to_vmem [thread:$0]  %s1, 512, %s24, [#allocation4], 128, 128, 8
    $region9: #{tpu_custom_call.1} parent=1 // pred_fallthru
      _
    // Predicated region
    $region10: #{tpu_custom_call.1} parent=1 // pred_check
      _
    $region11: #{tpu_custom_call.1} parent=1 // pred_check_branch
      %31 = sbr.rel (0) target = $region13
    $region12: #{tpu_custom_call.1} parent=1 // pred_region
      _
    $region13: #{tpu_custom_call.1} parent=1 // pred_fallthru
      _
    // Predicated region
    $region14: #{tpu_custom_call.1} parent=1 // pred_check
      _
    $region15: #{tpu_custom_call.1} parent=1 // pred_check_branch
      %33 = sbr.rel (0) target = $region17
    $region16: #{tpu_custom_call.1} parent=1 // pred_region
      %s35 = ssub.s32 512, 512
      %36 = vsyncadd [#allocation7], %s35
      %s37 = sshll.u32 [#allocation6], 4
      %s38 = int_to_ptr.vmem [resolvable:$true] %s37
      %43 = dma.hbm_to_vmem [thread:$0]  %s3, 512, %s38, [#allocation7], 128, 128, 8
    $region17: #{tpu_custom_call.1} parent=1 // pred_fallthru
      _
    // Predicated region
    $region18: #{tpu_custom_call.1} parent=1 // pred_check
      _
    $region19: #{tpu_custom_call.1} parent=1 // pred_check_branch
      %45 = sbr.rel (0) target = $region21
    $region20: #{tpu_custom_call.1} parent=1 // pred_region
      %46 = dma.done [#allocation4], 512
    $region21: #{tpu_custom_call.1} parent=1 // pred_fallthru
      _
    // Predicated region
    $region22: #{tpu_custom_call.1} parent=1 // pred_check
      _
    $region23: #{tpu_custom_call.1} parent=1 // pred_check_branch
      %48 = sbr.rel (0) target = $region25
    $region24: #{tpu_custom_call.1} parent=1 // pred_region
      %49 = dma.done [#allocation7], 512
    $region25: #{tpu_custom_call.1} parent=1 // pred_fallthru
      _
    %p50 = scmp.eq.s32.totalorder 0, 0
    // Predicated region
    $region26: #{tpu_custom_call.1} parent=1 // pred_check
      %p51 = pneg %p50
    $region27: #{tpu_custom_call.1} parent=1 // pred_check_branch
      %53 = sbr.rel (%p51) target = $region29
    $region28: #{tpu_custom_call.1} parent=1 // pred_region
      %v54 = vld [vmem:[#allocation3] sm:$0xff]
      %v55 = vld [vmem:[#allocation3 + $0x8] sm:$0xff]
      %v56 = vld [vmem:[#allocation3 + $0x10] sm:$0xff]
      %v57 = vld [vmem:[#allocation3 + $0x18] sm:$0xff]
      %v58 = vmul.f32 %v54, %v54
      %v59 = vmul.f32 %v55, %v55
      %v60 = vmul.f32 %v56, %v56
      %v61 = vmul.f32 %v57, %v57
      %vm62 = vcmask 326656
      %v63 = vsel %vm62, %v58, 0.0
      %v64 = vsel %vm62, %v59, 0.0
      %v65 = vadd.f32 %v63, %v64
      %v66 = vsel %vm62, %v60, 0.0
      %v67 = vadd.f32 %v65, %v66
      %v68 = vsel %vm62, %v61, 0.0
      %v69 = vadd.f32 %v67, %v68
      %v70 = vrot.slane %v69, 4
      %v71 = vadd.f32 %v69, %v70
      %v72 = vrot.slane %v71, 2
      %v73 = vadd.f32 %v71, %v72
      %v74 = vrot.slane %v73, 1
      %v75 = vadd.f32 %v73, %v74
      %v76 = vrsqrt.pop %v75
      %v77 = vmul.f32 %v54, %v76
      %v78 = vmul.f32 %v55, %v76
      %v79 = vmul.f32 %v56, %v76
      %v80 = vmul.f32 %v57, %v76
      %v81 = vlaneseq
      %v82 = vand.u32 %v81, 127
      %vm83 = vcmp.lt.s32.totalorder %v82, 32
      %v84 = vsel %vm83, %v77, %v54
      %v85 = vsel %vm83, %v78, %v55
      %v86 = vsel %vm83, %v79, %v56
      %v87 = vsel %vm83, %v80, %v57
      %v88 = vld [vmem:[#allocation6] sm:$0xff]
      %v89 = vld [vmem:[#allocation6 + $0x8] sm:$0xff]
      %v90 = vld [vmem:[#allocation6 + $0x10] sm:$0xff]
      %v91 = vld [vmem:[#allocation6 + $0x18] sm:$0xff]
      %v92 = vmul.f32 %v88, %v88
      %v93 = vmul.f32 %v89, %v89
      %v94 = vmul.f32 %v90, %v90
      %v95 = vmul.f32 %v91, %v91
      %v96 = vsel %vm62, %v92, 0.0
      %v97 = vsel %vm62, %v93, 0.0
      %v98 = vadd.f32 %v96, %v97
      %v99 = vsel %vm62, %v94, 0.0
      %v100 = vadd.f32 %v98, %v99
      %v101 = vsel %vm62, %v95, 0.0
      %v102 = vadd.f32 %v100, %v101
      %v103 = vrot.slane %v102, 4
      %v104 = vadd.f32 %v102, %v103
      %v105 = vrot.slane %v104, 2
      %v106 = vadd.f32 %v104, %v105
      %v107 = vrot.slane %v106, 1
      %v108 = vadd.f32 %v106, %v107
      %v109 = vrsqrt.pop %v108
      %v110 = vmul.f32 %v88, %v109
      %v111 = vmul.f32 %v89, %v109
      %v112 = vmul.f32 %v90, %v109
      %v113 = vmul.f32 %v91, %v109
      %v114 = vsel %vm83, %v110, %v88
      %v115 = vsel %vm83, %v111, %v89
      %v116 = vsel %vm83, %v112, %v90
      %v117 = vsel %vm83, %v113, %v91
      %118 = vst.msk [vmem:[#allocation9] sm:$0xff] %vm62, %v84
      %119 = vst.msk [vmem:[#allocation9 + $0x8] sm:$0xff] %vm62, %v85
      %120 = vst.msk [vmem:[#allocation9 + $0x10] sm:$0xff] %vm62, %v86
      %121 = vst.msk [vmem:[#allocation9 + $0x18] sm:$0xff] %vm62, %v87
      %122 = vst.msk [vmem:[#allocation11] sm:$0xff] %vm62, %v114
      %123 = vst.msk [vmem:[#allocation11 + $0x8] sm:$0xff] %vm62, %v115
      %124 = vst.msk [vmem:[#allocation11 + $0x10] sm:$0xff] %vm62, %v116
      %125 = vst.msk [vmem:[#allocation11 + $0x18] sm:$0xff] %vm62, %v117
      %v126 = vld [vmem:[%s2] sm:$0xff]
      %v127 = vld [vmem:[%s2 + $0x8] sm:$0xff]
      %v128 = vld [vmem:[%s2 + $0x10] sm:$0xff]
      %v129 = vld [vmem:[%s2 + $0x18] sm:$0xff]
      %134 = vrot.lane.b32.xlu0 %v126, 40
      %v135 = vpop.permute.xlu0 %134
      %136 = vrot.lane.b32.xlu0 %v127, 40
      %v137 = vpop.permute.xlu0 %136
      %138 = vrot.lane.b32.xlu0 %v128, 40
      %v139 = vpop.permute.xlu0 %138
      %140 = vrot.lane.b32.xlu0 %v129, 40
      %v141 = vpop.permute.xlu0 %140
      %150 = vrot.lane.b32.xlu0 %v114, 56
      %v151 = vpop.permute.xlu0 %150
      %152 = vrot.lane.b32.xlu0 %v115, 56
      %v153 = vpop.permute.xlu0 %152
      %154 = vrot.lane.b32.xlu0 %v116, 56
      %v155 = vpop.permute.xlu0 %154
      %156 = vrot.lane.b32.xlu0 %v117, 56
      %v157 = vpop.permute.xlu0 %156
      %v162 = vsel %vm62, %v84, %v135
      %v163 = vsel %vm62, %v85, %v137
      %v164 = vsel %vm62, %v86, %v139
      %v165 = vsel %vm62, %v87, %v141
      %vm166 = vcmask 457728
      %v167 = vsel %vm166, %v162, %v151
      %v168 = vsel %vm166, %v163, %v153
      %v169 = vsel %vm166, %v164, %v155
      %v170 = vsel %vm166, %v165, %v157
      %vm171 = vcmask 785408
      %172 = vst.msk [vmem:[#allocation2] sm:$0xff] %vm171, %v167
      %173 = vst.msk [vmem:[#allocation2 + $0x8] sm:$0xff] %vm171, %v168
      %174 = vst.msk [vmem:[#allocation2 + $0x10] sm:$0xff] %vm171, %v169
      %175 = vst.msk [vmem:[#allocation2 + $0x18] sm:$0xff] %vm171, %v170
    $region29: #{tpu_custom_call.1} parent=1 // pred_fallthru
      _
    %v176 = vld [vmem:[%s0] sm:$0xff]
    %v177 = vlaneseq
    %v178 = vshrl.u32 %v177, 7
    %v179 = vadd.s32 %v178, 8
    %v180 = vadd.s32 %v178, 16
    %v181 = vadd.s32 %v178, 24
    %v182 = vadd.s32 %v178, 32
    %v183 = vlaneseq
    %v184 = vshrl.u32 %v183, 7
    %v185 = vsub.s32 0, %v184
    %v186 = vrot.slane %v176, %v185
    %vm187 = vcmp.eq.s32.totalorder %v178, %v186
    %vm188 = vcmp.eq.s32.totalorder %v179, %v186
    %vm189 = vcmp.eq.s32.totalorder %v180, %v186
    %vm190 = vcmp.eq.s32.totalorder %v181, %v186
    %vm191 = vcmp.eq.s32.totalorder %v182, %v186
    %v192 = vsel %vm187, 1, 0
    %v193 = vsel %vm188, 1, 0
    %v194 = vsel %vm189, 1, 0
    %v195 = vsel %vm190, 1, 0
    %v196 = vsel %vm191, 1, 0
    %v197 = vcvt.s32.f32 %v192
    %v198 = vcvt.s32.f32 %v193
    %v199 = vcvt.s32.f32 %v194
    %v200 = vcvt.s32.f32 %v195
    %v201 = vcvt.s32.f32 %v196
    %v202 = vlaneseq
    %v203 = vshrl.u32 %v202, 7
    %v204 = vsub.s32 1, %v203
    %v205 = vrot.slane %v176, %v204
    %vm206 = vcmp.eq.s32.totalorder %v178, %v205
    %vm207 = vcmp.eq.s32.totalorder %v179, %v205
    %v208 = vsel %vm206, 1, 0
    %v209 = vsel %vm207, 1, 0
    %v210 = vcvt.s32.f32 %v208
    %v211 = vcvt.s32.f32 %v209
    %v212 = vlaneseq
    %v213 = vshrl.u32 %v212, 7
    %v214 = vsub.s32 2, %v213
    %v215 = vrot.slane %v176, %v214
    %vm216 = vcmp.eq.s32.totalorder %v178, %v215
    %vm217 = vcmp.eq.s32.totalorder %v179, %v215
    %vm218 = vcmp.eq.s32.totalorder %v180, %v215
    %vm219 = vcmp.eq.s32.totalorder %v181, %v215
    %vm220 = vcmp.eq.s32.totalorder %v182, %v215
    %v221 = vsel %vm216, 1, 0
    %v222 = vsel %vm217, 1, 0
    %v223 = vsel %vm218, 1, 0
    %v224 = vsel %vm219, 1, 0
    %v225 = vsel %vm220, 1, 0
    %v226 = vcvt.s32.f32 %v221
    %v227 = vcvt.s32.f32 %v222
    %v228 = vcvt.s32.f32 %v223
    %v229 = vcvt.s32.f32 %v224
    %v230 = vcvt.s32.f32 %v225
    %v231 = vsub.f32 0.0, %v226
    %v232 = vsub.f32 0.0, %v227
    %v233 = vsub.f32 0.0, %v228
    %v234 = vsub.f32 0.0, %v229
    %v235 = vsub.f32 0.0, %v230
    %v236 = vlaneseq
    %v237 = vshrl.u32 %v236, 7
    %v238 = vsub.s32 3, %v237
    %v239 = vrot.slane %v176, %v238
    %vm240 = vcmp.eq.s32.totalorder %v178, %v239
    %vm241 = vcmp.eq.s32.totalorder %v179, %v239
    %vm242 = vcmp.eq.s32.totalorder %v180, %v239
    %vm243 = vcmp.eq.s32.totalorder %v181, %v239
    %vm244 = vcmp.eq.s32.totalorder %v182, %v239
    %v245 = vsel %vm240, 1, 0
    %v246 = vsel %vm241, 1, 0
    %v247 = vsel %vm242, 1, 0
    %v248 = vsel %vm243, 1, 0
    %v249 = vsel %vm244, 1, 0
    %v250 = vcvt.s32.f32 %v245
    %v251 = vcvt.s32.f32 %v246
    %v252 = vcvt.s32.f32 %v247
    %v253 = vcvt.s32.f32 %v248
    %v254 = vcvt.s32.f32 %v249
    %v255 = vlaneseq
    %v256 = vshrl.u32 %v255, 7
    %v257 = vsub.s32 4, %v256
    %v258 = vrot.slane %v176, %v257
    %vm259 = vcmp.eq.s32.totalorder %v178, %v258
    %vm260 = vcmp.eq.s32.totalorder %v179, %v258
    %v261 = vsel %vm259, 1, 0
    %v262 = vsel %vm260, 1, 0
    %v263 = vcvt.s32.f32 %v261
    %v264 = vcvt.s32.f32 %v262
    %v265 = vlaneseq
    %v266 = vshrl.u32 %v265, 7
    %v267 = vsub.s32 5, %v266
    %v268 = vrot.slane %v176, %v267
    %vm269 = vcmp.eq.s32.totalorder %v178, %v268
    %vm270 = vcmp.eq.s32.totalorder %v179, %v268
    %vm271 = vcmp.eq.s32.totalorder %v180, %v268
    %vm272 = vcmp.eq.s32.totalorder %v181, %v268
    %vm273 = vcmp.eq.s32.totalorder %v182, %v268
    %v274 = vsel %vm269, 1, 0
    %v275 = vsel %vm270, 1, 0
    %v276 = vsel %vm271, 1, 0
    %v277 = vsel %vm272, 1, 0
    %v278 = vsel %vm273, 1, 0
    %v279 = vcvt.s32.f32 %v274
    %v280 = vcvt.s32.f32 %v275
    %v281 = vcvt.s32.f32 %v276
    %v282 = vcvt.s32.f32 %v277
    %v283 = vcvt.s32.f32 %v278
    %v284 = vsub.f32 0.0, %v279
    %v285 = vsub.f32 0.0, %v280
    %v286 = vsub.f32 0.0, %v281
    %v287 = vsub.f32 0.0, %v282
    %v288 = vsub.f32 0.0, %v283
    %v289 = vld [vmem:[#allocation2] sm:$0xff]
    %v290 = vld [vmem:[#allocation2 + $0x8] sm:$0xff]
    %v291 = vld [vmem:[#allocation2 + $0x10] sm:$0xff]
    %v292 = vld [vmem:[#allocation2 + $0x18] sm:$0xff]
    %vm293 = vcmask 785408
    %v295 = vsel %vm293, %v289, 0
    %v298 = vsel %vm293, %v290, 0
    %v301 = vsel %vm293, %v291, 0
    %v304 = vsel %vm293, %v292, 0
    %306 = vmatprep.subr.mxu0 %v250
    %307 = vmatpush1.msra.mxu0 %v197
    %308 = vmatprep.subr.mxu0 %v251
    %309 = vmatpush1.msra.mxu0 %v198
    %310 = vmatprep.subr.mxu0 %v252
    %311 = vmatpush1.msra.mxu0 %v199
    %312 = vmatprep.subr.mxu0 %v253
    %313 = vmatpush1.msra.mxu0 %v200
    %314 = vmatprep.subr.mxu0 %v254
    %315 = vmatpush1.msra.mxu0 %v201
    %316 = vmatprep.subr.mxu0 %v263
    %317 = vmatpush1.msra.mxu0 %v210
    %318 = vmatprep.subr.mxu0 %v264
    %319 = vmatpush1.msra.mxu0 %v211
    %320 = vmatprep.subr.mxu0 %v284
    %321 = vmatpush1.msra.mxu0 %v231
    %322 = vmatprep.subr.mxu0 %v285
    %323 = vmatpush1.msra.mxu0 %v232
    %324 = vmatprep.subr.mxu0 %v286
    %325 = vmatpush1.msra.mxu0 %v233
    %326 = vmatprep.subr.mxu0 %v287
    %327 = vmatpush1.msra.mxu0 %v234
    %328 = vmatprep.subr.mxu0 %v288
    %329 = vmatpush1.msra.mxu0 %v235
    %330 = vmatprep.subr.mxu0 0.0
    %331 = vmatpush1.msra.mxu0 0.0
    %332 = vmatprep.subr.mxu0 0.0
    %333 = vmatpush1.msra.mxu0 0.0
    %334 = vmatprep.subr.mxu0 0.0
    %335 = vmatpush1.msra.mxu0 0.0
    %336 = vmatprep.subr.mxu0 0.0
    %337 = vmatpush1.msra.mxu0 0.0
    %338 = vmatprep.subr.mxu0 0.0
    %339 = vmatpush1.msra.mxu0 0.0
    %340 = vmatprep.subr.mxu0 0.0
    %341 = vmatpush1.msra.mxu0 0.0
    %342 = vmatprep.subr.mxu0 0.0
    %343 = vmatpush1.msra.mxu0 0.0
    %344 = vmatprep.subr.mxu0 0.0
    %345 = vmatpush1.msra.mxu0 0.0
    %346 = vmatprep.subr.mxu0 0.0
    %347 = vmatpush1.msra.mxu0 0.0
    %348 = vmatprep.subr.mxu0 0.0
    %349 = vmatpush1.msra.mxu0 0.0
    %350 = vmatprep.subr.mxu0 0.0
    %351 = vmatpush1.msra.mxu0 0.0
    %352 = vmatprep.subr.mxu0 0.0
    %353 = vmatpush1.msra.mxu0 0.0
    %354 = vmatprep.subr.mxu0 0.0
    %355 = vmatpush1.msra.mxu0 0.0
    %356 = vmatprep.subr.mxu0 0.0
    %357 = vmatpush1.msra.mxu0 0.0
    %358 = vmatprep.subr.mxu0 0.0
    %359 = vmatpush1.msra.mxu0 0.0
    %360 = vmatprep.subr.mxu0 0.0
    %361 = vmatpush1.msra.mxu0 0.0
    %362 = vmatprep.subr.mxu0 0.0
    %363 = vmatpush1.msra.mxu0 0.0
    %364 = vmatprep.subr.mxu0 0.0
    %365 = vmatpush1.msra.mxu0 0.0
    %366 = vmatprep.subr.mxu0 0.0
    %367 = vmatpush1.msra.mxu0 0.0
    %368 = vmatprep.subr.mxu0 0.0
    %369 = vmatpush1.msra.mxu0 0.0
    %370 = vmatprep.mubr.f32.mxu0 0.0
    %371 = vmatmul.mubr.f32.gmra.mrb[0].mxu0 %v295
    %v372 = vpop.f32.mrb[0].mxu0
    %v373 = vadd.f32 0.0, %v372
    %v374 = vpop.f32.mrb[0].mxu0
    %v375 = vadd.f32 0.0, %v374
    %376 = vmatprep.mubr.f32.mxu0 0.0
    %377 = vmatmul.mubr.f32.gmra.mrb[0].mxu0 %v298
    %v378 = vpop.f32.mrb[0].mxu0
    %v379 = vadd.f32 0.0, %v378
    %v380 = vpop.f32.mrb[0].mxu0
    %v381 = vadd.f32 0.0, %v380
    %382 = vmatprep.mubr.f32.mxu0 0.0
    %383 = vmatmul.mubr.f32.gmra.mrb[0].mxu0 %v301
    %v384 = vpop.f32.mrb[0].mxu0
    %v385 = vadd.f32 0.0, %v384
    %v386 = vpop.f32.mrb[0].mxu0
    %v387 = vadd.f32 0.0, %v386
    %388 = vmatprep.mubr.f32.mxu0 0.0
    %389 = vmatmul.mubr.f32.gmra.mrb[0].mxu0 %v304
    %v390 = vpop.f32.mrb[0].mxu0
    %v391 = vadd.f32 0.0, %v390
    %v392 = vpop.f32.mrb[0].mxu0
    %v393 = vadd.f32 0.0, %v392
    %394 = vdwg.mxu0
    %v395 = vand.u32 2147483647, %v373
    %v396 = vand.u32 2147483647, %v375
    %v397 = vand.u32 2147483647, %v379
    %v398 = vand.u32 2147483647, %v381
    %v399 = vand.u32 2147483647, %v385
    %v400 = vand.u32 2147483647, %v387
    %v401 = vand.u32 2147483647, %v391
    %v402 = vand.u32 2147483647, %v393
    %v403 = vadd.f32 %v395, %v397
    %v404 = vadd.f32 %v403, %v399
    %v405 = vadd.f32 %v404, %v401
    %v406 = vrot.slane %v405, 4
    %v407 = vadd.f32 %v405, %v406
    %v408 = vrot.slane %v407, 2
    %v409 = vadd.f32 %v407, %v408
    %v410 = vrot.slane %v409, 1
    %v411 = vadd.f32 %v409, %v410
    %v412 = vadd.f32 %v396, %v398
    %v413 = vadd.f32 %v412, %v400
    %v414 = vadd.f32 %v413, %v402
    %v415 = vrot.slane %v414, 4
    %v416 = vadd.f32 %v414, %v415
    %v417 = vrot.slane %v416, 2
    %v418 = vadd.f32 %v416, %v417
    %v419 = vrot.slane %v418, 1
    %v420 = vadd.f32 %v418, %v419
    %v421 = vsub.f32 %v411, %v420
    %v422 = vadd.f32 %v421, 1.0
    %v423 = vmax.f32 %v422, 0.0
    %vm424 = vcmask 1040384
    %v425 = vsel %vm424, %v423, %v411
    %vm426 = vcmask 1041408
    %v427 = vsel %vm426, %v425, %v420
    %vm428 = vcmask 1042432
    %v429 = vsel %vm428, %v427, 0.0
    %430 = vst [vmem:[#allocation8] sm:$0xff] %v429
    // Predicated region
    $region30: #{tpu_custom_call.1} parent=1 // pred_check
      _
    $region31: #{tpu_custom_call.1} parent=1 // pred_check_branch
      %432 = sbr.rel (0) target = $region33
    $region32: #{tpu_custom_call.1} parent=1 // pred_region
      %s434 = ssub.s32 128, 128
      %435 = vsyncadd [#allocation5], %s434
      %s437 = sshll.u32 [#allocation8], 4
      %s438 = int_to_ptr.vmem [resolvable:$true] %s437
      %440 = dma.vmem_to_hbm [thread:$0]  %s438, 128, %s4, [#allocation5]
    $region33: #{tpu_custom_call.1} parent=1 // pred_fallthru
      _
    // Predicated region
    $region34: #{tpu_custom_call.1} parent=1 // pred_check
      _
    $region35: #{tpu_custom_call.1} parent=1 // pred_check_branch
      %442 = sbr.rel (0) target = $region37
    $region36: #{tpu_custom_call.1} parent=1 // pred_region
      %s444 = ssub.s32 512, 512
      %445 = vsyncadd [#allocation10], %s444
      %s446 = sshll.u32 [#allocation9], 4
      %s447 = int_to_ptr.vmem [resolvable:$true] %s446
      %452 = dma.vmem_to_hbm [thread:$0]  %s447, 512, %s5, [#allocation10], 128, 128, 8
    $region37: #{tpu_custom_call.1} parent=1 // pred_fallthru
      _
    // Predicated region
    $region38: #{tpu_custom_call.1} parent=1 // pred_check
      _
    $region39: #{tpu_custom_call.1} parent=1 // pred_check_branch
      %454 = sbr.rel (0) target = $region41
    $region40: #{tpu_custom_call.1} parent=1 // pred_region
      %s456 = ssub.s32 512, 512
      %457 = vsyncadd [#allocation10], %s456
      %s458 = sshll.u32 [#allocation11], 4
      %s459 = int_to_ptr.vmem [resolvable:$true] %s458
      %464 = dma.vmem_to_hbm [thread:$0]  %s459, 512, %s6, [#allocation10], 128, 128, 8
    $region41: #{tpu_custom_call.1} parent=1 // pred_fallthru
      _
    // Predicated region
    $region42: #{tpu_custom_call.1} parent=1 // pred_check
      _
    $region43: #{tpu_custom_call.1} parent=1 // pred_check_branch
      %466 = sbr.rel (0) target = $region45
    $region44: #{tpu_custom_call.1} parent=1 // pred_region
      %467 = dma.done [#allocation5], 128
    $region45: #{tpu_custom_call.1} parent=1 // pred_fallthru
      _
    // Predicated region
    $region46: #{tpu_custom_call.1} parent=1 // pred_check
      _
    $region47: #{tpu_custom_call.1} parent=1 // pred_check_branch
      %469 = sbr.rel (0) target = $region49
    $region48: #{tpu_custom_call.1} parent=1 // pred_region
      %470 = dma.done [#allocation10], 512
    $region49: #{tpu_custom_call.1} parent=1 // pred_fallthru
      _
    // Predicated region
    $region50: #{tpu_custom_call.1} parent=1 // pred_check
      _
    $region51: #{tpu_custom_call.1} parent=1 // pred_check_branch
      %472 = sbr.rel (0) target = $region53
    $region52: #{tpu_custom_call.1} parent=1 // pred_region
      %473 = dma.done [#allocation10], 512
    $region53: #{tpu_custom_call.1} parent=1 // pred_fallthru
      _
    %474 = vsyncpa [#allocation4], 1
    %475 = vsyncpa [#allocation7], 1
    %476 = vsyncpa [#allocation5], 1
    %477 = vsyncpa [#allocation10], 1

</llo_original>
